<compile_context>
chip_gen: v7x
topology: tpu7x:2x2x1
jax: 0.10.0
libtpu: 0.0.40
codegen_flags: <defaults>
</compile_context>

<pallas_src>
import functools
import math

import jax
import jax.numpy as jnp
from jax.experimental import pallas as pl
from jax.experimental.pallas import tpu as pltpu


def _round_up(v, m):
    return (v + m - 1) // m * m


def _gcn_matmul_relu_kernel(a_ref, x_ref, o_ref):
    """One (tm, tn) tile of relu(A @ x); k (grid axis 2) is the reduction.

    The output BlockSpec returns the same (i, j) block for every k, so o_ref
    stays resident in VMEM across the reduction and doubles as the f32
    accumulator (no separate scratch, no finalize copy).
    """
    k = pl.program_id(2)

    @pl.when(k == 0)
    def _():
        o_ref[...] = jnp.zeros_like(o_ref)

    o_ref[...] += jnp.dot(
        a_ref[...], x_ref[...], preferred_element_type=jnp.float32
    )

    @pl.when(k == pl.num_programs(2) - 1)
    def _():
        o_ref[...] = jnp.maximum(o_ref[...], 0.0)


def _choose_tiles(n, f, tm, tn, tk):
    """Adaptive tile / padding selection.

    - feature dim padded to a multiple of 128 (lane-dense stores); a single
      feature tile (tn = f_pad) whenever f_pad <= 1024 so A is read once.
    - node dim: for small graphs use one full-extent tile (rounded to 8) so we
      don't pay lcm(tm, tk)-sized padding; otherwise 512-wide tiles.
    """
    f_pad = _round_up(f, 128)
    if tn is None:
        if f_pad <= 1024:
            tn = f_pad
        else:
            tn = 512                       # 256-aligned for v6e/v7x MXU
            f_pad = _round_up(f_pad, tn)
    else:
        f_pad = _round_up(f_pad, tn)

    if n <= min(tm, tk):
        # Single tile along the node dim; tk == n_pad satisfies the
        # "last block dim is full array extent" layout rule.
        tm = tk = _round_up(n, 8)
        n_pad = tm
    else:
        n_pad = _round_up(n, math.lcm(tm, tk))
    return tm, tn, tk, n_pad, f_pad


@functools.partial(jax.jit, static_argnames=("tm", "tn", "tk"))
def gcn_forward(x, edge_index, *, tm=512, tn=None, tk=512):
    """x: [N, F] float32; edge_index: [2, E] int32 (row 0 = j/src, row 1 = i/dst)."""
    n, f = x.shape
    ej = edge_index[0]
    ei = edge_index[1]

    # degree of target nodes (torch_geometric.utils.degree(edge_index_i, N)).
    # Zero in-degree nodes give deg^-0.5 = inf exactly as the torch module does.
    deg = jnp.zeros((n,), dtype=x.dtype).at[ei].add(
        jnp.ones_like(ei, dtype=x.dtype))
    deg_inv_sqrt = deg ** -0.5
    norm = deg_inv_sqrt[ej] * deg_inv_sqrt[ei]

    tm, tn, tk, n_pad, f_pad = _choose_tiles(n, f, tm, tn, tk)

    # Dense normalized adjacency built at padded size.  Scatter in f32 so
    # duplicate/parallel edges accumulate exactly, cast to bf16 for the MXU;
    # both live in the same jit region so XLA fuses the cast with the
    # scatter's consumer instead of materializing A twice.
    a = jnp.zeros((n_pad, n_pad), dtype=jnp.float32).at[ei, ej].add(
        norm.astype(jnp.float32))
    a_b = a.astype(jnp.bfloat16)
    x_b = jnp.zeros((n_pad, f_pad), dtype=jnp.bfloat16).at[:n, :f].set(
        x.astype(jnp.bfloat16))

    grid = (n_pad // tm, f_pad // tn, n_pad // tk)
    n_i, n_j, n_k = grid

    out_p = pl.pallas_call(
        _gcn_matmul_relu_kernel,
        out_shape=jax.ShapeDtypeStruct((n_pad, f_pad), x.dtype),
        grid_spec=pltpu.PrefetchScalarGridSpec(
            num_scalar_prefetch=0,
            grid=grid,
            in_specs=[
                pl.BlockSpec((tm, tk), lambda i, j, k: (i, k)),   # A tile
                pl.BlockSpec((tk, tn), lambda i, j, k: (k, j)),   # x tile
            ],
            out_specs=pl.BlockSpec((tm, tn), lambda i, j, k: (i, j)),
        ),
        compiler_params=pltpu.CompilerParams(
            dimension_semantics=("parallel", "parallel", "arbitrary"),
            # ~7 MiB/step double-buffered at the default tiles; 48 MiB leaves
            # headroom for bigger tiles while staying under v7x's 64 MiB VMEM.
            vmem_limit_bytes=48 * 1024 * 1024,
        ),
        cost_estimate=pl.CostEstimate(
            flops=2 * n_pad * n_pad * f_pad,
            transcendentals=0,
            bytes_accessed=int(
                n_pad * n_pad * 2 * n_j           # A (bf16), re-read per j tile
                + n_pad * f_pad * 2 * n_i         # x (bf16), re-read per i tile
                + n_pad * f_pad * x.dtype.itemsize  # out (written once per (i,j))
            ),
        ),
    )(a_b, x_b)

    return out_p[:n, :f]


if __name__ == "__main__":
    key = jax.random.PRNGKey(0)
    k_x, k_src, k_dst = jax.random.split(key, 3)

    N = 16          # number of nodes
    F = 32          # feature ("hidden") dimension
    E_rand = 48     # random edges (plus N self-loops)

    x = jax.random.normal(k_x, (N, F), dtype=jnp.float32)

    src = jax.random.randint(k_src, (E_rand,), 0, N, dtype=jnp.int32)
    dst = jax.random.randint(k_dst, (E_rand,), 0, N, dtype=jnp.int32)
    # Self-loops keep every in-degree >= 1 so deg^-0.5 stays finite (the torch
    # module itself would emit inf for zero in-degree source nodes).
    loops = jnp.arange(N, dtype=jnp.int32)
    edge_index = jnp.stack(
        [jnp.concatenate([src, loops]), jnp.concatenate([dst, loops])], axis=0
    )

    out = gcn_forward(x, edge_index)
    jax.block_until_ready(out)

    # Pure-JAX reference of the same math (bf16 matmul inputs, f32 accumulate,
    # matching the kernel's precision).
    ej, ei = edge_index[0], edge_index[1]
    deg = jnp.zeros((N,), jnp.float32).at[ei].add(1.0)
    dis = deg ** -0.5
    norm = dis[ej] * dis[ei]
    a_ref = jnp.zeros((N, N), jnp.float32).at[ei, ej].add(norm)
    ref = jnp.maximum(
        jnp.dot(a_ref.astype(jnp.bfloat16), x.astype(jnp.bfloat16),
                preferred_element_type=jnp.float32),
        0.0,
    )

    assert out.shape == (N, F)
    assert jnp.allclose(out, ref, atol=2e-2, rtol=2e-2), (
        "max abs err = %f" % float(jnp.max(jnp.abs(out - ref))))

    print("KERNEL_OK")
</pallas_src>

<mosaic_0001>
module attributes {stable_mosaic.version = 11 : i64} {
  func.func private @main(%arg0: i32) attributes {dimension_semantics = [#tpu.dimension_semantics<core_parallel>], iteration_bounds = array<i64: 2>, tpu.core_type = #tpu.core_type<sc_scalar_subcore>, window_params = []} {
    return
  }
}

module attributes {stable_mosaic.version = 11 : i64} {
  func.func private @main(%arg0: i32) attributes {dimension_semantics = [#tpu.dimension_semantics<core_parallel>], iteration_bounds = array<i64: 2>, tpu.core_type = #tpu.core_type<sc_scalar_subcore>, window_params = []} {
    return
  }
}

module attributes {stable_mosaic.version = 11 : i64} {
  func.func @_gcn_matmul_relu_kernel(%arg0: i32, %arg1: i32, %arg2: i32, %arg3: memref<16x16xbf16, #tpu.memory_space<vmem>>, %arg4: memref<16x128xbf16, #tpu.memory_space<vmem>>, %arg5: memref<16x128xf32, #tpu.memory_space<vmem>>) attributes {dimension_semantics = [#tpu.dimension_semantics<parallel>, #tpu.dimension_semantics<parallel>, #tpu.dimension_semantics<arbitrary>], iteration_bounds = array<i64: 1, 1, 1>, scalar_prefetch = 0 : i64, scratch_operands = 0 : i64, tpu.core_type = #tpu.core_type<tc>, window_params = [{transform_indices = @transform_0, window_bounds = array<i64: 16, 16>}, {transform_indices = @transform_1, window_bounds = array<i64: 16, 128>}, {transform_indices = @transform_2, window_bounds = array<i64: 16, 128>}]} {
    %c0_i32 = arith.constant 0 : i32
    %0 = arith.cmpi eq, %arg2, %c0_i32 : i32
    %1 = arith.extui %0 : i1 to i32
    %c0_i32_0 = arith.constant 0 : i32
    %2 = arith.cmpi ne, %1, %c0_i32_0 : i32
    scf.if %2 {
      %cst_10 = arith.constant 0.000000e+00 : f32
      %12 = vector.broadcast %cst_10 : f32 to vector<16x128xf32>
      %c0_11 = arith.constant 0 : index
      %c0_12 = arith.constant 0 : index
      %13 = vector.load %arg5[%c0_11, %c0_12] : memref<16x128xf32, #tpu.memory_space<vmem>>, vector<16x128xf32>
      tpu.vector_store %arg5[%c0_11, %c0_12], %12 {strides = array<i32>} : memref<16x128xf32, #tpu.memory_space<vmem>>, vector<16x128xf32>,
    } else {
    }
    %c0 = arith.constant 0 : index
    %c0_1 = arith.constant 0 : index
    %3 = vector.load %arg5[%c0, %c0_1] : memref<16x128xf32, #tpu.memory_space<vmem>>, vector<16x128xf32>
    %c0_2 = arith.constant 0 : index
    %c0_3 = arith.constant 0 : index
    %4 = vector.load %arg3[%c0_2, %c0_3] : memref<16x16xbf16, #tpu.memory_space<vmem>>, vector<16x16xbf16>
    %c0_4 = arith.constant 0 : index
    %c0_5 = arith.constant 0 : index
    %5 = vector.load %arg4[%c0_4, %c0_5] : memref<16x128xbf16, #tpu.memory_space<vmem>>, vector<16x128xbf16>
    %cst = arith.constant dense<0.000000e+00> : vector<16x128xf32>
    %6 = tpu.matmul %4, %5, %cst {dimension_numbers = #tpu.dot_dimension_numbers<[1], [0], [0], [1], [0, 0, 1, 1], [], []>} : vector<16x16xbf16>, vector<16x128xbf16>, vector<16x128xf32> -> vector<16x128xf32>
    %7 = arith.addf %3, %6 : vector<16x128xf32>
    %c0_6 = arith.constant 0 : index
    %c0_7 = arith.constant 0 : index
    %8 = vector.load %arg5[%c0_6, %c0_7] : memref<16x128xf32, #tpu.memory_space<vmem>>, vector<16x128xf32>
    tpu.vector_store %arg5[%c0_6, %c0_7], %7 {strides = array<i32>} : memref<16x128xf32, #tpu.memory_space<vmem>>, vector<16x128xf32>,
    %c0_i32_8 = arith.constant 0 : i32
    %9 = arith.cmpi eq, %arg2, %c0_i32_8 : i32
    %10 = arith.extui %9 : i1 to i32
    %c0_i32_9 = arith.constant 0 : i32
    %11 = arith.cmpi ne, %10, %c0_i32_9 : i32
    scf.if %11 {
      %c0_10 = arith.constant 0 : index
      %c0_11 = arith.constant 0 : index
      %12 = vector.load %arg5[%c0_10, %c0_11] : memref<16x128xf32, #tpu.memory_space<vmem>>, vector<16x128xf32>
      %cst_12 = arith.constant 0.000000e+00 : f32
      %13 = vector.broadcast %cst_12 : f32 to vector<16x128xf32>
      %14 = arith.maximumf %12, %13 : vector<16x128xf32>
      %c0_13 = arith.constant 0 : index
      %c0_14 = arith.constant 0 : index
      %15 = vector.load %arg5[%c0_13, %c0_14] : memref<16x128xf32, #tpu.memory_space<vmem>>, vector<16x128xf32>
      tpu.vector_store %arg5[%c0_13, %c0_14], %14 {strides = array<i32>} : memref<16x128xf32, #tpu.memory_space<vmem>>, vector<16x128xf32>,
    } else {
    }
    return
  }
  func.func @transform_0(%arg0: i32, %arg1: i32, %arg2: i32) -> (i32, i32) {
    %c0_i32 = arith.constant 0 : i32
    return %arg0, %arg2 : i32, i32
  }
  func.func @transform_1(%arg0: i32, %arg1: i32, %arg2: i32) -> (i32, i32) {
    %c0_i32 = arith.constant 0 : i32
    return %arg2, %arg1 : i32, i32
  }
  func.func @transform_2(%arg0: i32, %arg1: i32, %arg2: i32) -> (i32, i32) {
    %c0_i32 = arith.constant 0 : i32
    return %arg0, %arg1 : i32, i32
  }
}

</mosaic_0001>

<llo_original>
// kernel: mul.1
$region0: #{mul.1}
  #allocation0 [shape = 's32[1]{0}', space=sflag, size = 0x4, scoped, tag = 'scoped memory for mul.1']
  %s0 = inlined_call_operand.vmem [shape: f32[64], index: 0, kind: input, shape index: {}]
  %s1 = inlined_call_operand.vmem [shape: f32[64], index: 1, kind: input, shape index: {}]
  %s2 = inlined_call_operand.vmem [shape: f32[64], index: 2, kind: output, shape index: {}]
  %v3 = vld [vmem:[%s0] sm:$0x1]
  %v4 = vld [vmem:[%s1] sm:$0x1]
  %5 = xla_tuple %v3, %v4
  %6 = xla_tuple %5
  %v7 = vmul.f32 %v3, %v4
  %8 = xla_tuple %v7
  %9 = vst [vmem:[%s2] sm:$0x1] %v7

// kernel: gcn_forward.1
$region0: #{gcn_forward.1}
  #allocation0 [shape = 'u32[]', space=smem, size = 0x4, offset = 0x4, fixed_abs, tag = 'smem constant byte address 0x4 - core index']
  #allocation1 [shape = 'u32[144,128]{1,0:T(1,128)}', space=vmem, size = 0x12000, scoped, tag = 'internal scratch']
  %s0 = inlined_call_operand.vmem [shape: bf16[16,16], index: 0, kind: input, shape index: {}]
  %s1 = inlined_call_operand.vmem [shape: bf16[16,128], index: 1, kind: input, shape index: {}]
  %s2 = inlined_call_operand.hbm [shape: f32[16,128], index: 2, kind: output, shape index: {}]
  %s3 = sld [smem:[#allocation0]]
  $region26: #{gcn_forward.1} parent=0
    _
  %s5 = ssub.s32 1, %s3
  %s6 = scalar_select 0, %s5, %s3
  $region1: #{gcn_forward.1} parent=0
    #allocation2 [shape = 'u8[8192]{0}', space=vmem, size = 0x2000, scoped, tag = 'output window, operand 0, single buffered']
    #allocation3 [shape = 's32[1]{0}', space=sflag, size = 0x4, scoped, tag = 'scoped memory for gcn_forward.1']
    %7 = vsyncpa [#allocation3], 0
    // Predicated region
    $region2: #{gcn_forward.1} parent=1 // pred_check
      _
    $region3: #{gcn_forward.1} parent=1 // pred_check_branch
      %9 = sbr.rel (0) target = $region5
    $region4: #{gcn_forward.1} parent=1 // pred_region
      _
    $region5: #{gcn_forward.1} parent=1 // pred_fallthru
      _
    // Predicated region
    $region6: #{gcn_forward.1} parent=1 // pred_check
      _
    $region7: #{gcn_forward.1} parent=1 // pred_check_branch
      %11 = sbr.rel (0) target = $region9
    $region8: #{gcn_forward.1} parent=1 // pred_region
      _
    $region9: #{gcn_forward.1} parent=1 // pred_fallthru
      _
    %p13 = scmp.eq.s32.totalorder 0, 0
    // Predicated region
    $region10: #{gcn_forward.1} parent=1 // pred_check
      %p14 = pneg %p13
    $region11: #{gcn_forward.1} parent=1 // pred_check_branch
      %16 = sbr.rel (%p14) target = $region13
    $region12: #{gcn_forward.1} parent=1 // pred_region
      %17 = vst [vmem:[#allocation2] sm:$0xff] 0.0
      %18 = vst [vmem:[#allocation2 + $0x8] sm:$0xff] 0.0
    $region13: #{gcn_forward.1} parent=1 // pred_fallthru
      _
    %v19 = vld [vmem:[#allocation2] sm:$0xff]
    %v20 = vld [vmem:[#allocation2 + $0x8] sm:$0xff]
    %v21 = vld [vmem:[%s0] sm:$0xf]
    %v22 = vld [vmem:[%s0 + $0x4] sm:$0xf]
    %v23 = vld [vmem:[%s1] sm:$0xf]
    %v24 = vld [vmem:[%s1 + $0x4] sm:$0xf]
    %v27 = vunpack.c.l.b16 %v21
    %v28 = vunpack.c.l.b16 %v22
    %v29 = vpack.c.b16 %v28, %v27
    %v32 = vunpack.c.l.b16 %v23
    %v33 = vunpack.c.l.b16 %v24
    %v34 = vpack.c.b16 %v33, %v32
    %vm36 = vcmask 130048
    %v38 = vsel %vm36, %v29, 0
    %40 = vmatprep.subr.bf16.mxu0 0
    %41 = vmatpush1.bf16.msra.mxu0 %v34
    %42 = vmatprep.subr.bf16.mxu0 0
    %43 = vmatpush1.bf16.msra.mxu0 0
    %44 = vmatprep.subr.bf16.mxu0 0
    %45 = vmatpush1.bf16.msra.mxu0 0
    %46 = vmatprep.subr.bf16.mxu0 0
    %47 = vmatpush1.bf16.msra.mxu0 0
    %48 = vmatprep.subr.bf16.mxu0 0
    %49 = vmatpush1.bf16.msra.mxu0 0
    %50 = vmatprep.subr.bf16.mxu0 0
    %51 = vmatpush1.bf16.msra.mxu0 0
    %52 = vmatprep.subr.bf16.mxu0 0
    %53 = vmatpush1.bf16.msra.mxu0 0
    %54 = vmatprep.subr.bf16.mxu0 0
    %55 = vmatpush1.bf16.msra.mxu0 0
    %56 = vmatprep.subr.bf16.mxu0 0
    %57 = vmatpush1.bf16.msra.mxu0 0
    %58 = vmatprep.subr.bf16.mxu0 0
    %59 = vmatpush1.bf16.msra.mxu0 0
    %60 = vmatprep.subr.bf16.mxu0 0
    %61 = vmatpush1.bf16.msra.mxu0 0
    %62 = vmatprep.subr.bf16.mxu0 0
    %63 = vmatpush1.bf16.msra.mxu0 0
    %64 = vmatprep.subr.bf16.mxu0 0
    %65 = vmatpush1.bf16.msra.mxu0 0
    %66 = vmatprep.subr.bf16.mxu0 0
    %67 = vmatpush1.bf16.msra.mxu0 0
    %68 = vmatprep.subr.bf16.mxu0 0
    %69 = vmatpush1.bf16.msra.mxu0 0
    %70 = vmatprep.subr.bf16.mxu0 0
    %71 = vmatpush1.bf16.msra.mxu0 0
    %72 = vmatprep.mubr.bf16.mxu0 0
    %73 = vmatmul.mubr.bf16.gmra.mrb[0].mxu0 %v38
    %v74 = vpop.f32.mrb[0].mxu0
    %v75 = vadd.f32 0.0, %v74
    %v76 = vpop.f32.mrb[0].mxu0
    %v77 = vpop.f32.mrb[0].mxu0
    %v78 = vadd.f32 0.0, %v77
    %v79 = vpop.f32.mrb[0].mxu0
    %80 = vdwg.mxu0
    %v81 = vadd.f32 %v19, %v75
    %v82 = vadd.f32 %v20, %v78
    %83 = vst [vmem:[#allocation2] sm:$0xff] %v81
    %84 = vst [vmem:[#allocation2 + $0x8] sm:$0xff] %v82
    // Predicated region
    $region14: #{gcn_forward.1} parent=1 // pred_check
      %p85 = pneg %p13
    $region15: #{gcn_forward.1} parent=1 // pred_check_branch
      %87 = sbr.rel (%p85) target = $region17
    $region16: #{gcn_forward.1} parent=1 // pred_region
      %v88 = vld [vmem:[#allocation2] sm:$0xff]
      %v89 = vld [vmem:[#allocation2 + $0x8] sm:$0xff]
      %v90 = vmax.f32 %v88, 0.0
      %v91 = vmax.f32 %v89, 0.0
      %92 = vst [vmem:[#allocation2] sm:$0xff] %v90
      %93 = vst [vmem:[#allocation2 + $0x8] sm:$0xff] %v91
    $region17: #{gcn_forward.1} parent=1 // pred_fallthru
      _
    // Predicated region
    $region18: #{gcn_forward.1} parent=1 // pred_check
      _
    $region19: #{gcn_forward.1} parent=1 // pred_check_branch
      %95 = sbr.rel (0) target = $region21
    $region20: #{gcn_forward.1} parent=1 // pred_region
      %s97 = ssub.s32 256, 256
      %98 = vsyncadd [#allocation3], %s97
      %s99 = sshll.u32 [#allocation2], 4
      %s100 = int_to_ptr.vmem [resolvable:$true] %s99
      %105 = dma.vmem_to_hbm [thread:$0]  %s100, 256, %s2, [#allocation3], 128, 128, 8
    $region21: #{gcn_forward.1} parent=1 // pred_fallthru
      _
    // Predicated region
    $region22: #{gcn_forward.1} parent=1 // pred_check
      _
    $region23: #{gcn_forward.1} parent=1 // pred_check_branch
      %107 = sbr.rel (0) target = $region25
    $region24: #{gcn_forward.1} parent=1 // pred_region
      %108 = dma.done [#allocation3], 256
    $region25: #{gcn_forward.1} parent=1 // pred_fallthru
      _
    %109 = vsyncpa [#allocation3], 1

</llo_original>
